<compile_context>
chip_gen: v7x
topology: tpu7x:2x2x1
jax: 0.10.0
libtpu: 0.0.40
codegen_flags: <defaults>
</compile_context>

<pallas_src>
import math
import numpy as np
import jax
import jax.numpy as jnp
from jax.experimental import pallas as pl
from jax.experimental.pallas import tpu as pltpu

# Problem sizes (small, consistent with the module)
B = 2            # batch
H = 2            # num_heads
M = 3            # num_marks
IN_FEATS = 32
OUT_FEATS = 32
D = OUT_FEATS // H    # head_feats = 16
LQ = 8
LK = 8
NEG_INF = float(-2.0 ** 32 + 1)

R = B * LQ            # 16 fused query rows
CK = B * LK           # 16 fused key rows (per head block)
W = H * CK            # 32 fused (head, key) columns
DM = D * M            # 48
HM = H * M            # 6

# constant-slab-B row layout
SEL_ROW = 2 * DM      # 96  : selector [6, 96]
WIT_ROW = SEL_ROW + HM  # 102: fc_i weight row acting on timespan, tiled per head
BI_ROW = WIT_ROW + 1    # 103: fc_i bias, tiled per head
SC_ROW = BI_ROW + 1     # 104: exp(scale_i), tiled per head
WB_ROWS = SC_ROW + 1    # 105


def aia_kernel(x_ref, aux_ref, wa_ref, wb_ref, o_ref, inty_ref):
    f32 = jnp.float32
    bf16 = jnp.bfloat16

    x = x_ref[...]                                       # [32, 33] f32: [q|ts ; k|0]
    xin_bf = x[:, :IN_FEATS].astype(bf16)                # [32, 32]
    ts_col = x[:R, IN_FEATS:IN_FEATS + 1]                # [16, 1]
    q_resid = x[:R, :OUT_FEATS]                          # [16, 32]

    wa = wa_ref[...]                                     # [32, 224] bf16
    wb = wb_ref[...]                                     # [105, 96] f32
    aux = aux_ref[...]                                   # [16, 128] f32

    # 1) One MXU push projects queries -> Q (pre-scaled by 1/sqrt(out)) and
    #    keys -> K|V|T, all heads at once.
    proj = jnp.dot(xin_bf, wa[:, :4 * OUT_FEATS],
                   preferred_element_type=f32)           # [32, 128]
    qall = proj[:R, :OUT_FEATS]                          # [16, 32]
    kvt = proj[R:R + CK, OUT_FEATS:4 * OUT_FEATS]        # [16, 96]  K|V|T

    # 2) Head-block-diagonal K / V / T built in one shot (lane masks + concat).
    lane = jax.lax.broadcasted_iota(jnp.int32, (1, 3 * OUT_FEATS), 1)
    hm0 = ((lane % OUT_FEATS) < D).astype(f32)
    hm1 = 1.0 - hm0
    bd = jnp.concatenate([kvt * hm0, kvt * hm1], axis=0).astype(bf16)   # [32, 96]
    k_bd = bd[:, :OUT_FEATS]                             # [32(h*16+key), 32(feat)]
    v_bd = bd[:, OUT_FEATS:2 * OUT_FEATS]                # [32(h*16+key), 32(h*16+d)]
    t_bd = bd[:, 2 * OUT_FEATS:]

    # 3) Fused scores for both heads/batches; causal + cross-batch mask -> NEG_INF.
    s = jnp.dot(qall.astype(bf16), k_bd.T, preferred_element_type=f32)  # [16, 32]
    s = jnp.where(aux[:, :W] == 0.0, f32(NEG_INF), s)

    def block_softmax(sb):                               # softmax per head block
        mx = jnp.max(sb, axis=-1, keepdims=True)
        ex = jnp.exp(sb - mx)
        return ex * pl.reciprocal(jnp.sum(ex, axis=-1, keepdims=True), approx=True)

    attn = jnp.concatenate([block_softmax(s[:, :CK]),
                            block_softmax(s[:, CK:])], axis=1)          # [16, 32]
    attn_bf = attn.astype(bf16)

    # 4) E = attn @ T for both heads in one push.
    e2 = jnp.dot(attn_bf, t_bd, preferred_element_type=f32)             # [16, 32]

    # 5) intensities(): fc_i fused over heads; sigmoid via EUP tanh.
    pre = (jnp.dot(e2.astype(bf16), wa[:, 4 * OUT_FEATS:],
                   preferred_element_type=f32)
           + ts_col * wb[WIT_ROW:WIT_ROW + 1, :]
           + wb[BI_ROW:BI_ROW + 1, :])                                  # [16, 96]
    u = 0.5 * (jnp.tanh(0.5 * pre) + 1.0)                               # sigmoid

    # 6) Per-(head, mark) intensity via one tiny matmul + vectorized safe softplus.
    z = jnp.dot(u, wb[:2 * DM, :HM], preferred_element_type=f32)        # [16, 6]
    sp = jnp.maximum(z, 0.0) + jnp.log(1.0 + jnp.exp(-jnp.abs(z)))
    inty6 = wb[SC_ROW:SC_ROW + 1, :HM] * sp                             # [16, 6]
    inty_ref[...] = inty6

    # 7) Broadcast intensities onto the fused (head, key) lanes with a constant
    #    selector matmul; mark reduction = 1 multiply + 2 adds.
    inty_all = jnp.dot(inty6, wb[SEL_ROW:SEL_ROW + HM, :],
                       preferred_element_type=f32)                      # [16, 96]
    weighted = inty_all * aux[:, W:]                                    # [16, 96]
    mark_inty = weighted[:, :W] + weighted[:, W:2 * W] + weighted[:, 2 * W:]

    # TODO(synk): att_drop (nn.Dropout) is identity at p=0.0 / eval mode.
    attn2 = (attn * mark_inty).astype(bf16)
    out = jnp.dot(attn2, v_bd, preferred_element_type=f32)              # [16, 32]
    o_ref[...] = out + q_resid


@jax.jit
def aia_conv_pallas(queries, keys, timespans, attention_masks, event_marks, params):
    """queries/keys: [B, L, IN_FEATS]; timespans: [B, LQ];
    attention_masks: [H*B, LQ, LK]; event_marks: [H*B, LQ, LK, M]."""
    Wq, Wk, Wv, Wt, Wi, bi, weight_i, scale_i = params
    f32 = jnp.float32
    bf16 = jnp.bfloat16

    # -------- constant slab A (bf16): [Wq/sqrt | Wk | Wv | Wt | fc_i(E) blk-diag] ----
    inv_sqrt = 1.0 / math.sqrt(OUT_FEATS)
    w_proj = jnp.concatenate([Wq * inv_sqrt, Wk, Wv, Wt], axis=1)         # [32, 128]
    wie = Wi[:D]                                                          # [16, 48]
    zer = jnp.zeros_like(wie)
    wie_bd = jnp.concatenate(
        [jnp.concatenate([wie, zer], axis=1),
         jnp.concatenate([zer, wie], axis=1)], axis=0)                    # [32, 96]
    wa = jnp.concatenate([w_proj, wie_bd], axis=1).astype(bf16)           # [32, 224]

    # -------- constant slab B (f32): wz blk-diag, selector, fc_i(ts), bias, scale --
    scale = jnp.exp(scale_i)                                              # [M]
    wsc = weight_i / scale[:, None]                                       # [M, D]
    blk = (wsc[:, :, None] * jnp.eye(M, dtype=f32)[:, None, :]).reshape(DM, M)
    zm = jnp.zeros((DM, M), f32)
    wz_bd = jnp.concatenate(
        [jnp.concatenate([blk, zm], axis=1),
         jnp.concatenate([zm, blk], axis=1)], axis=0)                     # [96, 6]
    sel_np = np.zeros((HM, M * W), np.float32)                            # [6, 96]
    for h in range(H):
        for m in range(M):
            sel_np[h * M + m, m * W + h * CK: m * W + h * CK + CK] = 1.0
    wb = jnp.zeros((WB_ROWS, M * W), f32)
    wb = wb.at[:2 * DM, :HM].set(wz_bd)
    wb = wb.at[SEL_ROW:SEL_ROW + HM, :].set(jnp.asarray(sel_np))
    wb = wb.at[WIT_ROW, :].set(jnp.tile(Wi[D], H))                        # [96]
    wb = wb.at[BI_ROW, :].set(jnp.tile(bi, H))                            # [96]
    wb = wb.at[SC_ROW, :HM].set(jnp.tile(scale, H))                       # [6]

    # -------- data slabs ----------------------------------------------------------
    q2 = queries.reshape(R, IN_FEATS).astype(f32)
    k2 = keys.reshape(CK, IN_FEATS).astype(f32)
    ts = timespans.reshape(R, 1).astype(f32)
    x_slab = jnp.concatenate(
        [jnp.concatenate([q2, ts], axis=1),
         jnp.concatenate([k2, jnp.zeros((CK, 1), f32)], axis=1)], axis=0)  # [32, 33]

    m4 = attention_masks.reshape(H, B, LQ, LK).astype(f32)
    # fused mask [16, 32]: cross-batch entries are 0 -> NEG_INF inside the kernel.
    fused_mask = jnp.einsum('hbqk,bc->bqhck', m4,
                            jnp.eye(B, dtype=f32)).reshape(R, W)
    em5 = event_marks.reshape(H, B, LQ, LK, M).astype(f32)
    em_w = em5.transpose(4, 2, 0, 1, 3).reshape(M, LQ, W)                  # [m, q, col]
    em_w = jnp.broadcast_to(em_w[:, None], (M, B, LQ, W)).reshape(M, R, W)
    em_flat = em_w.transpose(1, 0, 2).reshape(R, M * W)                    # [16, 96]
    aux = jnp.concatenate([fused_mask, em_flat], axis=1)                   # [16, 128]

    vmem = pl.BlockSpec(memory_space=pltpu.MemorySpace.VMEM)
    outs, inty6 = pl.pallas_call(
        aia_kernel,
        in_specs=[vmem, vmem, vmem, vmem],
        out_specs=(vmem, vmem),
        out_shape=(jax.ShapeDtypeStruct((R, OUT_FEATS), f32),
                   jax.ShapeDtypeStruct((R, HM), f32)),
        # advisory: ~0.5 MFLOP, ~2.2K transcendentals, ~70 KB moved
        cost_estimate=pl.CostEstimate(flops=500_000, transcendentals=2_500,
                                      bytes_accessed=70_000),
    )(x_slab, aux, wa, wb)

    outs = outs.reshape(B, LQ, OUT_FEATS)
    all_inty = inty6.reshape(B, LQ, H, M).transpose(2, 0, 1, 3).reshape(H * B, LQ, M)
    return outs, all_inty


def aia_conv_reference(queries, keys, timespans, attention_masks, event_marks, params):
    """Pure-JAX mirror of the PyTorch forward (for correctness check)."""
    Wq, Wk, Wv, Wt, Wi, bi, weight_i, scale_i = params
    Q = queries @ Wq
    K = keys @ Wk
    V = keys @ Wv
    T = keys @ Wt
    split = lambda X: jnp.concatenate(jnp.split(X, H, axis=2), axis=0)
    Q_, K_, V_, T_ = split(Q), split(K), split(V), split(T)
    outs = jnp.matmul(Q_, K_.transpose(0, 2, 1)) / math.sqrt(OUT_FEATS)
    outs = jnp.where(attention_masks == 0.0, NEG_INF, outs)
    outs = jax.nn.softmax(outs, axis=2)
    E_ = jnp.matmul(outs, T_)
    ts = jnp.tile(timespans[:, :, None], (H, 1, 1))
    mu = jnp.concatenate([E_, ts], axis=2)
    u = jax.nn.sigmoid(mu @ Wi + bi)
    u = u.reshape(H * B, LQ, M, D)
    scale = jnp.exp(scale_i)
    z = jnp.einsum('blmd,md->blm', u, weight_i) / scale
    all_inty = scale * jnp.log(1.0 + jnp.exp(z))
    mark_inty = jnp.sum(all_inty[:, :, None, :] * event_marks, axis=-1)
    outs = outs * mark_inty
    outs = jnp.matmul(outs, V_)
    outs = jnp.concatenate(jnp.split(outs, H, axis=0), axis=2)
    outs = outs + queries[..., :OUT_FEATS]
    return outs, all_inty


if __name__ == "__main__":
    key = jax.random.PRNGKey(0)
    ks = jax.random.split(key, 12)
    f32 = jnp.float32
    stddev = 0.02

    # Parameters (deterministic, matching the module's shapes; stored transposed vs torch)
    Wq = stddev * jax.random.normal(ks[0], (IN_FEATS, OUT_FEATS), f32)
    Wk = stddev * jax.random.normal(ks[1], (IN_FEATS, OUT_FEATS), f32)
    Wv = stddev * jax.random.normal(ks[2], (IN_FEATS, OUT_FEATS), f32)
    Wt = stddev * jax.random.normal(ks[3], (IN_FEATS, OUT_FEATS), f32)
    Wi = stddev * jax.random.normal(ks[4], (D + 1, D * M), f32)          # fc_i weight
    bi = stddev * jax.random.normal(ks[5], (D * M,), f32)                # fc_i bias
    bound = 1.0 / math.sqrt(D)                                           # kaiming_uniform(a=sqrt(5))
    weight_i = jax.random.uniform(ks[6], (M, D), f32, -bound, bound)
    scale_i = jnp.zeros((M,), f32)
    params = (Wq, Wk, Wv, Wt, Wi, bi, weight_i, scale_i)

    # Inputs
    queries = jax.random.normal(ks[7], (B, LQ, IN_FEATS), f32)
    keys = jax.random.normal(ks[8], (B, LK, IN_FEATS), f32)
    timespans = jax.random.uniform(ks[9], (B, LQ), f32, 0.0, 1.0)
    causal = jnp.tril(jnp.ones((LQ, LK), f32))
    attention_masks = jnp.broadcast_to(causal, (H * B, LQ, LK))
    mark_ids = jax.random.randint(ks[10], (LK,), 0, M)
    one_hot = jax.nn.one_hot(mark_ids, M, dtype=f32)                     # [Lk, M]
    event_marks = jnp.broadcast_to(one_hot[None, None], (H * B, LQ, LK, M))

    outs, all_inty = aia_conv_pallas(queries, keys, timespans,
                                     attention_masks, event_marks, params)
    outs = jax.block_until_ready(outs)
    all_inty = jax.block_until_ready(all_inty)

    ref_outs, ref_inty = aia_conv_reference(queries, keys, timespans,
                                            attention_masks, event_marks, params)
    assert outs.shape == (B, LQ, OUT_FEATS)
    assert all_inty.shape == (H * B, LQ, M)
    assert jnp.allclose(outs, ref_outs, rtol=5e-3, atol=5e-3), "outs mismatch"
    assert jnp.allclose(all_inty, ref_inty, rtol=5e-3, atol=5e-3), "intensity mismatch"

    print("KERNEL_OK")
</pallas_src>

<mosaic_0001>
module attributes {stable_mosaic.version = 11 : i64} {
  func.func @aia_kernel(%arg0: memref<32x33xf32, #tpu.memory_space<vmem>>, %arg1: memref<16x128xf32, #tpu.memory_space<vmem>>, %arg2: memref<32x224xbf16, #tpu.memory_space<vmem>>, %arg3: memref<105x96xf32, #tpu.memory_space<vmem>>, %arg4: memref<16x32xf32, #tpu.memory_space<vmem>>, %arg5: memref<16x6xf32, #tpu.memory_space<vmem>>) attributes {dimension_semantics = [], scalar_prefetch = 0 : i64, scratch_operands = 0 : i64, tpu.core_type = #tpu.core_type<tc>} {
    %c0 = arith.constant 0 : index
    %c0_0 = arith.constant 0 : index
    %0 = vector.load %arg0[%c0, %c0_0] : memref<32x33xf32, #tpu.memory_space<vmem>>, vector<32x33xf32>
    %1 = vector.extract_strided_slice %0 {offsets = [0, 0], sizes = [32, 32], strides = [1, 1]} : vector<32x33xf32> to vector<32x32xf32>
    %2 = arith.truncf %1 : vector<32x32xf32> to vector<32x32xbf16>
    %3 = vector.extract_strided_slice %0 {offsets = [0, 32], sizes = [16, 1], strides = [1, 1]} : vector<32x33xf32> to vector<16x1xf32>
    %4 = vector.extract_strided_slice %0 {offsets = [0, 0], sizes = [16, 32], strides = [1, 1]} : vector<32x33xf32> to vector<16x32xf32>
    %c0_1 = arith.constant 0 : index
    %c0_2 = arith.constant 0 : index
    %5 = vector.load %arg2[%c0_1, %c0_2] : memref<32x224xbf16, #tpu.memory_space<vmem>>, vector<32x224xbf16>
    %c0_3 = arith.constant 0 : index
    %c0_4 = arith.constant 0 : index
    %6 = vector.load %arg3[%c0_3, %c0_4] : memref<105x96xf32, #tpu.memory_space<vmem>>, vector<105x96xf32>
    %c0_5 = arith.constant 0 : index
    %c0_6 = arith.constant 0 : index
    %7 = vector.load %arg1[%c0_5, %c0_6] : memref<16x128xf32, #tpu.memory_space<vmem>>, vector<16x128xf32>
    %8 = vector.extract_strided_slice %5 {offsets = [0, 0], sizes = [32, 128], strides = [1, 1]} : vector<32x224xbf16> to vector<32x128xbf16>
    %cst = arith.constant dense<0.000000e+00> : vector<32x128xf32>
    %9 = tpu.matmul %2, %8, %cst {dimension_numbers = #tpu.dot_dimension_numbers<[1], [0], [0], [1], [0, 0, 1, 1], [], []>} : vector<32x32xbf16>, vector<32x128xbf16>, vector<32x128xf32> -> vector<32x128xf32>
    %10 = vector.extract_strided_slice %9 {offsets = [0, 0], sizes = [16, 32], strides = [1, 1]} : vector<32x128xf32> to vector<16x32xf32>
    %11 = vector.extract_strided_slice %9 {offsets = [16, 32], sizes = [16, 96], strides = [1, 1]} : vector<32x128xf32> to vector<16x96xf32>
    %12 = tpu.iota {dimensions = array<i32: 1>} : vector<1x96xi32>
    %c32_i32 = arith.constant 32 : i32
    %c0_i32 = arith.constant 0 : i32
    %13 = arith.cmpi eq, %c32_i32, %c0_i32 : i32
    %c1_i32 = arith.constant 1 : i32
    %14 = arith.select %13, %c1_i32, %c32_i32 : i32
    %15 = vector.broadcast %14 : i32 to vector<1x96xi32>
    %16 = arith.remsi %12, %15 : vector<1x96xi32>
    %c0_i32_7 = arith.constant 0 : i32
    %17 = vector.broadcast %c0_i32_7 : i32 to vector<1x96xi32>
    %18 = arith.cmpi ne, %16, %17 : vector<1x96xi32>
    %c0_i32_8 = arith.constant 0 : i32
    %19 = vector.broadcast %c0_i32_8 : i32 to vector<1x96xi32>
    %20 = arith.cmpi slt, %16, %19 : vector<1x96xi32>
    %c0_i32_9 = arith.constant 0 : i32
    %21 = arith.cmpi slt, %14, %c0_i32_9 : i32
    %22 = vector.broadcast %21 : i1 to vector<1x96xi1>
    %23 = vector.broadcast %22 : vector<1x96xi1> to vector<1x96xi1>
    %24 = arith.xori %20, %23 : vector<1x96xi1>
    %25 = arith.andi %24, %18 : vector<1x96xi1>
    %26 = vector.broadcast %14 : i32 to vector<1x96xi32>
    %27 = arith.addi %16, %26 : vector<1x96xi32>
    %28 = arith.select %25, %27, %16 : vector<1x96xi1>, vector<1x96xi32>
    %c16_i32 = arith.constant 16 : i32
    %29 = vector.broadcast %c16_i32 : i32 to vector<1x96xi32>
    %30 = arith.cmpi slt, %28, %29 : vector<1x96xi32>
    %31 = arith.extui %30 : vector<1x96xi1> to vector<1x96xi32>
    %32 = arith.sitofp %31 : vector<1x96xi32> to vector<1x96xf32>
    %cst_10 = arith.constant 1.000000e+00 : f32
    %33 = vector.broadcast %cst_10 : f32 to vector<1x96xf32>
    %34 = arith.subf %33, %32 : vector<1x96xf32>
    %35 = vector.broadcast %32 : vector<1x96xf32> to vector<16x96xf32>
    %36 = arith.mulf %11, %35 : vector<16x96xf32>
    %37 = vector.broadcast %34 : vector<1x96xf32> to vector<16x96xf32>
    %38 = arith.mulf %11, %37 : vector<16x96xf32>
    %39 = tpu.concatenate %36, %38 in 0 : vector<16x96xf32>, vector<16x96xf32> -> vector<32x96xf32>
    %40 = arith.truncf %39 : vector<32x96xf32> to vector<32x96xbf16>
    %41 = vector.extract_strided_slice %40 {offsets = [0, 0], sizes = [32, 32], strides = [1, 1]} : vector<32x96xbf16> to vector<32x32xbf16>
    %42 = vector.extract_strided_slice %40 {offsets = [0, 32], sizes = [32, 32], strides = [1, 1]} : vector<32x96xbf16> to vector<32x32xbf16>
    %43 = vector.extract_strided_slice %40 {offsets = [0, 64], sizes = [32, 32], strides = [1, 1]} : vector<32x96xbf16> to vector<32x32xbf16>
    %44 = arith.truncf %10 : vector<16x32xf32> to vector<16x32xbf16>
    %45 = tpu.transpose %41, [1, 0] : vector<32x32xbf16> -> vector<32x32xbf16>
    %cst_11 = arith.constant dense<0.000000e+00> : vector<16x32xf32>
    %46 = tpu.matmul %44, %45, %cst_11 {dimension_numbers = #tpu.dot_dimension_numbers<[1], [0], [0], [1], [0, 0, 1, 1], [], []>} : vector<16x32xbf16>, vector<32x32xbf16>, vector<16x32xf32> -> vector<16x32xf32>
    %47 = vector.extract_strided_slice %7 {offsets = [0, 0], sizes = [16, 32], strides = [1, 1]} : vector<16x128xf32> to vector<16x32xf32>
    %cst_12 = arith.constant 0.000000e+00 : f32
    %48 = vector.broadcast %cst_12 : f32 to vector<16x32xf32>
    %49 = arith.cmpf oeq, %47, %48 : vector<16x32xf32>
    %cst_13 = arith.constant -4.2949673E+9 : f32
    %50 = vector.broadcast %cst_13 : f32 to vector<16x32xf32>
    %51 = arith.select %49, %50, %46 : vector<16x32xi1>, vector<16x32xf32>
    %52 = vector.extract_strided_slice %51 {offsets = [0, 0], sizes = [16, 16], strides = [1, 1]} : vector<16x32xf32> to vector<16x16xf32>
    %cst_14 = arith.constant dense<0xFF800000> : vector<16xf32>
    %53 = vector.multi_reduction <maximumf>, %52, %cst_14 [1] : vector<16x16xf32> to vector<16xf32>
    %54 = vector.shape_cast %53 : vector<16xf32> to vector<16x1xf32>
    %55 = vector.broadcast %54 : vector<16x1xf32> to vector<16x16xf32>
    %56 = arith.subf %52, %55 : vector<16x16xf32>
    %57 = math.exp %56 : vector<16x16xf32>
    %cst_15 = arith.constant dense<0.000000e+00> : vector<16xf32>
    %58 = vector.multi_reduction <add>, %57, %cst_15 [1] : vector<16x16xf32> to vector<16xf32>
    %59 = vector.shape_cast %58 : vector<16xf32> to vector<16x1xf32>
    %60 = tpu.reciprocal %59 {approx = true} : vector<16x1xf32> -> vector<16x1xf32>
    %61 = vector.broadcast %60 : vector<16x1xf32> to vector<16x16xf32>
    %62 = arith.mulf %57, %61 : vector<16x16xf32>
    %63 = vector.extract_strided_slice %51 {offsets = [0, 16], sizes = [16, 16], strides = [1, 1]} : vector<16x32xf32> to vector<16x16xf32>
    %cst_16 = arith.constant dense<0xFF800000> : vector<16xf32>
    %64 = vector.multi_reduction <maximumf>, %63, %cst_16 [1] : vector<16x16xf32> to vector<16xf32>
    %65 = vector.shape_cast %64 : vector<16xf32> to vector<16x1xf32>
    %66 = vector.broadcast %65 : vector<16x1xf32> to vector<16x16xf32>
    %67 = arith.subf %63, %66 : vector<16x16xf32>
    %68 = math.exp %67 : vector<16x16xf32>
    %cst_17 = arith.constant dense<0.000000e+00> : vector<16xf32>
    %69 = vector.multi_reduction <add>, %68, %cst_17 [1] : vector<16x16xf32> to vector<16xf32>
    %70 = vector.shape_cast %69 : vector<16xf32> to vector<16x1xf32>
    %71 = tpu.reciprocal %70 {approx = true} : vector<16x1xf32> -> vector<16x1xf32>
    %72 = vector.broadcast %71 : vector<16x1xf32> to vector<16x16xf32>
    %73 = arith.mulf %68, %72 : vector<16x16xf32>
    %74 = tpu.concatenate %62, %73 in 1 : vector<16x16xf32>, vector<16x16xf32> -> vector<16x32xf32>
    %75 = arith.truncf %74 : vector<16x32xf32> to vector<16x32xbf16>
    %cst_18 = arith.constant dense<0.000000e+00> : vector<16x32xf32>
    %76 = tpu.matmul %75, %43, %cst_18 {dimension_numbers = #tpu.dot_dimension_numbers<[1], [0], [0], [1], [0, 0, 1, 1], [], []>} : vector<16x32xbf16>, vector<32x32xbf16>, vector<16x32xf32> -> vector<16x32xf32>
    %77 = arith.truncf %76 : vector<16x32xf32> to vector<16x32xbf16>
    %78 = vector.extract_strided_slice %5 {offsets = [0, 128], sizes = [32, 96], strides = [1, 1]} : vector<32x224xbf16> to vector<32x96xbf16>
    %cst_19 = arith.constant dense<0.000000e+00> : vector<16x96xf32>
    %79 = tpu.matmul %77, %78, %cst_19 {dimension_numbers = #tpu.dot_dimension_numbers<[1], [0], [0], [1], [0, 0, 1, 1], [], []>} : vector<16x32xbf16>, vector<32x96xbf16>, vector<16x96xf32> -> vector<16x96xf32>
    %80 = vector.extract_strided_slice %6 {offsets = [102, 0], sizes = [1, 96], strides = [1, 1]} : vector<105x96xf32> to vector<1x96xf32>
    %81 = vector.broadcast %3 : vector<16x1xf32> to vector<16x96xf32>
    %82 = vector.broadcast %80 : vector<1x96xf32> to vector<16x96xf32>
    %83 = arith.mulf %81, %82 : vector<16x96xf32>
    %84 = arith.addf %79, %83 : vector<16x96xf32>
    %85 = vector.extract_strided_slice %6 {offsets = [103, 0], sizes = [1, 96], strides = [1, 1]} : vector<105x96xf32> to vector<1x96xf32>
    %86 = vector.broadcast %85 : vector<1x96xf32> to vector<16x96xf32>
    %87 = arith.addf %84, %86 : vector<16x96xf32>
    %cst_20 = arith.constant 5.000000e-01 : f32
    %88 = vector.broadcast %cst_20 : f32 to vector<16x96xf32>
    %89 = arith.mulf %88, %87 : vector<16x96xf32>
    %90 = math.tanh %89 : vector<16x96xf32>
    %cst_21 = arith.constant 1.000000e+00 : f32
    %91 = vector.broadcast %cst_21 : f32 to vector<16x96xf32>
    %92 = arith.addf %90, %91 : vector<16x96xf32>
    %cst_22 = arith.constant 5.000000e-01 : f32
    %93 = vector.broadcast %cst_22 : f32 to vector<16x96xf32>
    %94 = arith.mulf %93, %92 : vector<16x96xf32>
    %95 = vector.extract_strided_slice %6 {offsets = [0, 0], sizes = [96, 6], strides = [1, 1]} : vector<105x96xf32> to vector<96x6xf32>
    %cst_23 = arith.constant dense<0.000000e+00> : vector<16x6xf32>
    %96 = tpu.matmul %94, %95, %cst_23 {dimension_numbers = #tpu.dot_dimension_numbers<[1], [0], [0], [1], [0, 0, 1, 1], [], []>} : vector<16x96xf32>, vector<96x6xf32>, vector<16x6xf32> -> vector<16x6xf32>
    %cst_24 = arith.constant 0.000000e+00 : f32
    %97 = vector.broadcast %cst_24 : f32 to vector<16x6xf32>
    %98 = arith.maximumf %96, %97 : vector<16x6xf32>
    %99 = math.absf %96 : vector<16x6xf32>
    %cst_25 = arith.constant 0.000000e+00 : f32
    %100 = vector.broadcast %cst_25 : f32 to vector<16x6xf32>
    %101 = arith.subf %100, %99 : vector<16x6xf32>
    %102 = math.exp %101 : vector<16x6xf32>
    %cst_26 = arith.constant 1.000000e+00 : f32
    %103 = vector.broadcast %cst_26 : f32 to vector<16x6xf32>
    %104 = arith.addf %103, %102 : vector<16x6xf32>
    %105 = math.log %104 : vector<16x6xf32>
    %106 = arith.addf %98, %105 : vector<16x6xf32>
    %107 = vector.extract_strided_slice %6 {offsets = [104, 0], sizes = [1, 6], strides = [1, 1]} : vector<105x96xf32> to vector<1x6xf32>
    %108 = vector.broadcast %107 : vector<1x6xf32> to vector<16x6xf32>
    %109 = arith.mulf %108, %106 : vector<16x6xf32>
    %c0_27 = arith.constant 0 : index
    %c0_28 = arith.constant 0 : index
    %110 = vector.load %arg5[%c0_27, %c0_28] : memref<16x6xf32, #tpu.memory_space<vmem>>, vector<16x6xf32>
    tpu.vector_store %arg5[%c0_27, %c0_28], %109 {strides = array<i32>} : memref<16x6xf32, #tpu.memory_space<vmem>>, vector<16x6xf32>,
    %111 = vector.extract_strided_slice %6 {offsets = [96, 0], sizes = [6, 96], strides = [1, 1]} : vector<105x96xf32> to vector<6x96xf32>
    %cst_29 = arith.constant dense<0.000000e+00> : vector<16x96xf32>
    %112 = tpu.matmul %109, %111, %cst_29 {dimension_numbers = #tpu.dot_dimension_numbers<[1], [0], [0], [1], [0, 0, 1, 1], [], []>} : vector<16x6xf32>, vector<6x96xf32>, vector<16x96xf32> -> vector<16x96xf32>
    %113 = vector.extract_strided_slice %7 {offsets = [0, 32], sizes = [16, 96], strides = [1, 1]} : vector<16x128xf32> to vector<16x96xf32>
    %114 = arith.mulf %112, %113 : vector<16x96xf32>
    %115 = vector.extract_strided_slice %114 {offsets = [0, 0], sizes = [16, 32], strides = [1, 1]} : vector<16x96xf32> to vector<16x32xf32>
    %116 = vector.extract_strided_slice %114 {offsets = [0, 32], sizes = [16, 32], strides = [1, 1]} : vector<16x96xf32> to vector<16x32xf32>
    %117 = arith.addf %115, %116 : vector<16x32xf32>
    %118 = vector.extract_strided_slice %114 {offsets = [0, 64], sizes = [16, 32], strides = [1, 1]} : vector<16x96xf32> to vector<16x32xf32>
    %119 = arith.addf %117, %118 : vector<16x32xf32>
    %120 = arith.mulf %74, %119 : vector<16x32xf32>
    %121 = arith.truncf %120 : vector<16x32xf32> to vector<16x32xbf16>
    %cst_30 = arith.constant dense<0.000000e+00> : vector<16x32xf32>
    %122 = tpu.matmul %121, %42, %cst_30 {dimension_numbers = #tpu.dot_dimension_numbers<[1], [0], [0], [1], [0, 0, 1, 1], [], []>} : vector<16x32xbf16>, vector<32x32xbf16>, vector<16x32xf32> -> vector<16x32xf32>
    %123 = arith.addf %122, %4 : vector<16x32xf32>
    %c0_31 = arith.constant 0 : index
    %c0_32 = arith.constant 0 : index
    %124 = vector.load %arg4[%c0_31, %c0_32] : memref<16x32xf32, #tpu.memory_space<vmem>>, vector<16x32xf32>
    tpu.vector_store %arg4[%c0_31, %c0_32], %123 {strides = array<i32>} : memref<16x32xf32, #tpu.memory_space<vmem>>, vector<16x32xf32>,
    return
  }
}

</mosaic_0001>

<llo_original>
// kernel: tile.16
$region0: #{tile.16}
  #allocation0 [shape = 's32[1]{0}', space=sflag, size = 0x4, scoped, tag = 'scoped memory for tile.16']
  %s0 = inlined_call_operand.vmem [shape: f32[48], index: 0, kind: input, shape index: {}]
  %s1 = inlined_call_operand.vmem [shape: f32[2,48], index: 1, kind: output, shape index: {}]
  // Predicated region
  $region2: #{tile.16} parent=0 // pred_check
    _
  $region3: #{tile.16} parent=0 // pred_check_branch
    %3 = sbr.rel (0) target = $region5
  $region4: #{tile.16} parent=0 // pred_region
    _
  $region5: #{tile.16} parent=0 // pred_fallthru
    _
  %v4 = vld [vmem:[%s0] ss:$0 sm:$0xff]
  %5 = vst [vmem:[%s1] sm:$0x3] %v4

// kernel: tile.26
$region0: #{tile.26}
  #allocation0 [shape = 's32[1]{0}', space=sflag, size = 0x4, scoped, tag = 'scoped memory for tile.26']
  %s0 = inlined_call_operand.vmem [shape: f32[3], index: 0, kind: input, shape index: {}]
  %s1 = inlined_call_operand.vmem [shape: f32[2,3], index: 1, kind: output, shape index: {}]
  // Predicated region
  $region2: #{tile.26} parent=0 // pred_check
    _
  $region3: #{tile.26} parent=0 // pred_check_branch
    %3 = sbr.rel (0) target = $region5
  $region4: #{tile.26} parent=0 // pred_region
    _
  $region5: #{tile.26} parent=0 // pred_fallthru
    _
  %v4 = vld [vmem:[%s0] ss:$0 sm:$0xff]
  %5 = vst [vmem:[%s1] sm:$0x3] %v4

// kernel: aia_conv_pallas.1
$region0: #{aia_conv_pallas.1}
  #allocation0 [shape = 'u32[]', space=smem, size = 0x4, offset = 0x4, fixed_abs, tag = 'smem constant byte address 0x4 - core index']
  #allocation1 [shape = 'u32[144,128]{1,0:T(1,128)}', space=vmem, size = 0x12000, scoped, tag = 'internal scratch']
  %s0 = inlined_call_operand.vmem [shape: f32[32,33], index: 0, kind: input, shape index: {}]
  %s1 = inlined_call_operand.vmem [shape: f32[16,128], index: 1, kind: input, shape index: {}]
  %s2 = inlined_call_operand.vmem [shape: bf16[32,224], index: 2, kind: input, shape index: {}]
  %s3 = inlined_call_operand.vmem [shape: f32[105,96], index: 3, kind: input, shape index: {}]
  %s4 = inlined_call_operand.hbm [shape: f32[16,32], index: 4, kind: output, shape index: {0}]
  %s5 = inlined_call_operand.vmem [shape: f32[16,6], index: 5, kind: output, shape index: {1}]
  %6 = xla_tuple %s4, %s5
  %s7 = sld [smem:[#allocation0]]
  $region34: #{aia_conv_pallas.1} parent=0
    _
  %s9 = ssub.s32 1, %s7
  %s10 = scalar_select 0, %s9, %s7
  $region1: #{aia_conv_pallas.1} parent=0
    #allocation2 [shape = 'u8[8192]{0}', space=vmem, size = 0x2000, scoped, tag = 'output window, operand 0, single buffered']
    #allocation3 [shape = 's32[1]{0}', space=sflag, size = 0x4, scoped, tag = 'scoped memory for aia_conv_pallas.1']
    %11 = vsyncpa [#allocation3], 0
    // Predicated region
    $region2: #{aia_conv_pallas.1} parent=1 // pred_check
      _
    $region3: #{aia_conv_pallas.1} parent=1 // pred_check_branch
      %13 = sbr.rel (0) target = $region5
    $region4: #{aia_conv_pallas.1} parent=1 // pred_region
      _
    $region5: #{aia_conv_pallas.1} parent=1 // pred_fallthru
      _
    // Predicated region
    $region6: #{aia_conv_pallas.1} parent=1 // pred_check
      _
    $region7: #{aia_conv_pallas.1} parent=1 // pred_check_branch
      %15 = sbr.rel (0) target = $region9
    $region8: #{aia_conv_pallas.1} parent=1 // pred_region
      _
    $region9: #{aia_conv_pallas.1} parent=1 // pred_fallthru
      _
    // Predicated region
    $region10: #{aia_conv_pallas.1} parent=1 // pred_check
      _
    $region11: #{aia_conv_pallas.1} parent=1 // pred_check_branch
      %17 = sbr.rel (0) target = $region13
    $region12: #{aia_conv_pallas.1} parent=1 // pred_region
      _
    $region13: #{aia_conv_pallas.1} parent=1 // pred_fallthru
      _
    // Predicated region
    $region14: #{aia_conv_pallas.1} parent=1 // pred_check
      _
    $region15: #{aia_conv_pallas.1} parent=1 // pred_check_branch
      %19 = sbr.rel (0) target = $region17
    $region16: #{aia_conv_pallas.1} parent=1 // pred_region
      _
    $region17: #{aia_conv_pallas.1} parent=1 // pred_fallthru
      _
    %v21 = vld [vmem:[%s0] sm:$0xff]
    %v22 = vld [vmem:[%s0 + $0x8] sm:$0xff]
    %v23 = vld [vmem:[%s0 + $0x10] sm:$0xff]
    %v24 = vld [vmem:[%s0 + $0x18] sm:$0xff]
    %v25 = vpack.c.bf16 %v22, %v21
    %v26 = vpack.c.bf16 %v24, %v23
    %v27 = vld [vmem:[%s2] sm:$0xff]
    %v28 = vld [vmem:[%s2 + $0x8] sm:$0xff]
    %v29 = vld [vmem:[%s2 + $0x10] sm:$0xff]
    %v30 = vld [vmem:[%s2 + $0x18] sm:$0xff]
    %v31 = vld [vmem:[%s3] sm:$0xff]
    %v32 = vld [vmem:[%s3 + $0x8] sm:$0xff]
    %v33 = vld [vmem:[%s3 + $0x10] sm:$0xff]
    %v34 = vld [vmem:[%s3 + $0x18] sm:$0xff]
    %v35 = vld [vmem:[%s3 + $0x20] sm:$0xff]
    %v36 = vld [vmem:[%s3 + $0x28] sm:$0xff]
    %v37 = vld [vmem:[%s3 + $0x30] sm:$0xff]
    %v38 = vld [vmem:[%s3 + $0x38] sm:$0xff]
    %v39 = vld [vmem:[%s3 + $0x40] sm:$0xff]
    %v40 = vld [vmem:[%s3 + $0x48] sm:$0xff]
    %v41 = vld [vmem:[%s3 + $0x50] sm:$0xff]
    %v42 = vld [vmem:[%s3 + $0x58] sm:$0xff]
    %v43 = vld [vmem:[%s3 + $0x60] sm:$0xff]
    %v44 = vld [vmem:[%s3 + $0x68] sm:$0x1]
    %v45 = vld [vmem:[%s1] sm:$0xff]
    %v46 = vld [vmem:[%s1 + $0x8] sm:$0xff]
    %v51 = vunpack.c.l.b16 %v27
    %v52 = vunpack.c.l.b16 %v28
    %v53 = vunpack.c.l.b16 %v29
    %v54 = vunpack.c.l.b16 %v30
    %v55 = vpack.c.b16 %v52, %v51
    %v56 = vpack.c.b16 %v54, %v53
    %vm59 = vcmask 261120
    %v61 = vsel %vm59, %v25, 0
    %v64 = vsel %vm59, %v26, 0
    %66 = vmatprep.subr.bf16.mxu0 0
    %67 = vmatpush1.bf16.msra.mxu0 %v55
    %68 = vmatprep.subr.bf16.mxu0 0
    %69 = vmatpush1.bf16.msra.mxu0 %v56
    %70 = vmatprep.subr.bf16.mxu0 0
    %71 = vmatpush1.bf16.msra.mxu0 0
    %72 = vmatprep.subr.bf16.mxu0 0
    %73 = vmatpush1.bf16.msra.mxu0 0
    %74 = vmatprep.subr.bf16.mxu0 0
    %75 = vmatpush1.bf16.msra.mxu0 0
    %76 = vmatprep.subr.bf16.mxu0 0
    %77 = vmatpush1.bf16.msra.mxu0 0
    %78 = vmatprep.subr.bf16.mxu0 0
    %79 = vmatpush1.bf16.msra.mxu0 0
    %80 = vmatprep.subr.bf16.mxu0 0
    %81 = vmatpush1.bf16.msra.mxu0 0
    %82 = vmatprep.subr.bf16.mxu0 0
    %83 = vmatpush1.bf16.msra.mxu0 0
    %84 = vmatprep.subr.bf16.mxu0 0
    %85 = vmatpush1.bf16.msra.mxu0 0
    %86 = vmatprep.subr.bf16.mxu0 0
    %87 = vmatpush1.bf16.msra.mxu0 0
    %88 = vmatprep.subr.bf16.mxu0 0
    %89 = vmatpush1.bf16.msra.mxu0 0
    %90 = vmatprep.subr.bf16.mxu0 0
    %91 = vmatpush1.bf16.msra.mxu0 0
    %92 = vmatprep.subr.bf16.mxu0 0
    %93 = vmatpush1.bf16.msra.mxu0 0
    %94 = vmatprep.subr.bf16.mxu0 0
    %95 = vmatpush1.bf16.msra.mxu0 0
    %96 = vmatprep.subr.bf16.mxu0 0
    %97 = vmatpush1.bf16.msra.mxu0 0
    %98 = vmatprep.mubr.bf16.mxu0 0
    %99 = vmatmul.mubr.bf16.gmra.mrb[0].mxu0 %v61
    %v100 = vpop.f32.mrb[0].mxu0
    %v101 = vadd.f32 0.0, %v100
    %v102 = vpop.f32.mrb[0].mxu0
    %v103 = vpop.f32.mrb[0].mxu0
    %v104 = vadd.f32 0.0, %v103
    %v105 = vpop.f32.mrb[0].mxu0
    %106 = vmatprep.mubr.bf16.mxu0 0
    %107 = vmatmul.mubr.bf16.gmra.mrb[0].mxu0 %v64
    %v108 = vpop.f32.mrb[0].mxu0
    %v109 = vadd.f32 0.0, %v108
    %v110 = vpop.f32.mrb[0].mxu0
    %v111 = vpop.f32.mrb[0].mxu0
    %v112 = vadd.f32 0.0, %v111
    %v113 = vpop.f32.mrb[0].mxu0
    %114 = vdwg.mxu0
    %v115 = vlaneseq
    %v116 = vand.u32 %v115, 127
    %vm117 = vcmp.lt.s32.totalorder %v116, 0
    %v118 = vsub.s32 0, %v116
    %v119 = vsel %vm117, %v118, %v116
    %v120 = vshrl.u32 %v119, 5
    %v121 = vand.u32 %v119, 31
    %v122 = vsub.s32 0, %v121
    %v123 = vsel %vm117, %v122, %v121
    %vm124 = vcmp.ne.s32.totalorder %v123, 0
    %vm125 = vcmp.lt.s32.totalorder %v123, 0
    %vm126 = vmand %vm125, %vm124
    %v127 = vadd.s32 %v123, 32
    %v128 = vsel %vm126, %v127, %v123
    %vm129 = vcmp.lt.s32.totalorder %v128, 16
    %v130 = vsel %vm129, 1, 0
    %v131 = vcvt.s32.f32 %v130
    %v132 = vsub.f32 1.0, %v131
    %134 = vrot.lane.b32.xlu0 %v131, 32
    %v135 = vpop.permute.xlu0 %134
    %v137 = vmul.f32 %v109, %v135
    %v138 = vmul.f32 %v112, %v135
    %140 = vrot.lane.b32.xlu0 %v132, 32
    %v141 = vpop.permute.xlu0 %140
    %v143 = vmul.f32 %v109, %v141
    %v144 = vmul.f32 %v112, %v141
    %v145 = vpack.c.bf16 %v138, %v137
    %v146 = vpack.c.bf16 %v144, %v143
    %v147 = vpack.c.bf16 %v104, %v101
    %150 = vrot.lane.b32.xlu0 %v145, 96
    %v151 = vpop.permute.xlu0 %150
    %152 = vrot.lane.b32.xlu0 %v146, 96
    %v153 = vpop.permute.xlu0 %152
    %v155 = vsel %vm59, %v147, 0
    %v158 = vsel %vm59, %v151, 0
    %v161 = vsel %vm59, %v153, 0
    %163 = vmatprep.subr.bf16.mxu0 0
    %164 = vmatpush1.bf16.xpose.msra.mxu0 %v158
    %165 = vmatprep.subr.bf16.mxu0 0
    %166 = vmatpush1.bf16.xpose.msra.mxu0 %v161
    %167 = vmatprep.subr.bf16.mxu0 0
    %168 = vmatpush1.bf16.xpose.msra.mxu0 0
    %169 = vmatprep.subr.bf16.mxu0 0
    %170 = vmatpush1.bf16.xpose.msra.mxu0 0
    %171 = vmatprep.subr.bf16.mxu0 0
    %172 = vmatpush1.bf16.xpose.msra.mxu0 0
    %173 = vmatprep.subr.bf16.mxu0 0
    %174 = vmatpush1.bf16.xpose.msra.mxu0 0
    %175 = vmatprep.subr.bf16.mxu0 0
    %176 = vmatpush1.bf16.xpose.msra.mxu0 0
    %177 = vmatprep.subr.bf16.mxu0 0
    %178 = vmatpush1.bf16.xpose.msra.mxu0 0
    %179 = vmatprep.subr.bf16.mxu0 0
    %180 = vmatpush1.bf16.xpose.msra.mxu0 0
    %181 = vmatprep.subr.bf16.mxu0 0
    %182 = vmatpush1.bf16.xpose.msra.mxu0 0
    %183 = vmatprep.subr.bf16.mxu0 0
    %184 = vmatpush1.bf16.xpose.msra.mxu0 0
    %185 = vmatprep.subr.bf16.mxu0 0
    %186 = vmatpush1.bf16.xpose.msra.mxu0 0
    %187 = vmatprep.subr.bf16.mxu0 0
    %188 = vmatpush1.bf16.xpose.msra.mxu0 0
    %189 = vmatprep.subr.bf16.mxu0 0
    %190 = vmatpush1.bf16.xpose.msra.mxu0 0
    %191 = vmatprep.subr.bf16.mxu0 0
    %192 = vmatpush1.bf16.xpose.msra.mxu0 0
    %193 = vmatprep.subr.bf16.mxu0 0
    %194 = vmatpush1.bf16.xpose.msra.mxu0 0
    %195 = vmatprep.mubr.bf16.mxu0 0
    %196 = vmatmul.mubr.bf16.gmra.mrb[0].mxu0 %v155
    %v197 = vpop.f32.mrb[0].mxu0
    %v198 = vadd.f32 0.0, %v197
    %v199 = vpop.f32.mrb[0].mxu0
    %v200 = vpop.f32.mrb[0].mxu0
    %v201 = vadd.f32 0.0, %v200
    %v202 = vpop.f32.mrb[0].mxu0
    %203 = vdwg.mxu0
    %vm204 = vcmp.eq.f32.partialorder %v45, 0.0
    %vm205 = vcmp.eq.f32.partialorder %v46, 0.0
    %v206 = vsel %vm204, -4.2949673e+09, %v198
    %v207 = vsel %vm205, -4.2949673e+09, %v201
    %vm208 = vcmask 130048
    %v209 = vsel %vm208, %v206, -inf
    %210 = vmax.xlane.f32.xlu0 %v209
    %v211 = vpop.xlane.xlu0 %210
    %v212 = vsel %vm208, %v207, -inf
    %213 = vmax.xlane.f32.xlu0 %v212
    %v214 = vpop.xlane.xlu0 %213
    %v215 = vsub.f32 %v206, %v211
    %v216 = vsub.f32 %v207, %v214
    %v217 = vmul.f32 %v215, 1.442695
    %v218 = vpow.pop %v217
    %v219 = vmul.f32 %v216, 1.442695
    %v220 = vpow.pop %v219
    %v221 = vsel %vm208, %v218, 0.0
    %222 = vadd.xlane.f32.xlu0 %v221
    %v223 = vpop.xlane.xlu0 %222
    %v224 = vsel %vm208, %v220, 0.0
    %225 = vadd.xlane.f32.xlu0 %v224
    %v226 = vpop.xlane.xlu0 %225
    %v227 = vrcp.pop %v223
    %v228 = vrcp.pop %v226
    %v229 = vmul.f32 %v218, %v227
    %v230 = vmul.f32 %v220, %v228
    %vm231 = vcmask 261248
    %v232 = vsel %vm231, %v206, -inf
    %233 = vmax.xlane.f32.xlu0 %v232
    %v234 = vpop.xlane.xlu0 %233
    %v235 = vsel %vm231, %v207, -inf
    %236 = vmax.xlane.f32.xlu0 %v235
    %v237 = vpop.xlane.xlu0 %236
    %v238 = vsub.f32 %v206, %v234
    %v239 = vsub.f32 %v207, %v237
    %v240 = vmul.f32 %v238, 1.442695
    %v241 = vpow.pop %v240
    %v242 = vmul.f32 %v239, 1.442695
    %v243 = vpow.pop %v242
    %246 = vrot.lane.b32.xlu0 %v241, 112
    %v247 = vpop.permute.xlu0 %246
    %248 = vrot.lane.b32.xlu0 %v243, 112
    %v249 = vpop.permute.xlu0 %248
    %v252 = vsel %vm208, %v247, 0.0
    %253 = vadd.xlane.f32.xlu0 %v252
    %v254 = vpop.xlane.xlu0 %253
    %v255 = vsel %vm208, %v249, 0.0
    %256 = vadd.xlane.f32.xlu0 %v255
    %v257 = vpop.xlane.xlu0 %256
    %v258 = vrcp.pop %v254
    %v259 = vrcp.pop %v257
    %v260 = vmul.f32 %v241, %v258
    %v261 = vmul.f32 %v243, %v259
    %v262 = vsel %vm208, %v229, %v260
    %v263 = vsel %vm208, %v230, %v261
    %v264 = vpack.c.bf16 %v263, %v262
    %265 = vrot.lane.b32.xlu0 %v145, 32
    %v266 = vpop.permute.xlu0 %265
    %267 = vrot.lane.b32.xlu0 %v146, 32
    %v268 = vpop.permute.xlu0 %267
    %v272 = vsel %vm59, %v264, 0
    %274 = vmatprep.subr.bf16.mxu0 0
    %275 = vmatpush1.bf16.msra.mxu0 %v266
    %276 = vmatprep.subr.bf16.mxu0 0
    %277 = vmatpush1.bf16.msra.mxu0 %v268
    %278 = vmatprep.subr.bf16.mxu0 0
    %279 = vmatpush1.bf16.msra.mxu0 0
    %280 = vmatprep.subr.bf16.mxu0 0
    %281 = vmatpush1.bf16.msra.mxu0 0
    %282 = vmatprep.subr.bf16.mxu0 0
    %283 = vmatpush1.bf16.msra.mxu0 0
    %284 = vmatprep.subr.bf16.mxu0 0
    %285 = vmatpush1.bf16.msra.mxu0 0
    %286 = vmatprep.subr.bf16.mxu0 0
    %287 = vmatpush1.bf16.msra.mxu0 0
    %288 = vmatprep.subr.bf16.mxu0 0
    %289 = vmatpush1.bf16.msra.mxu0 0
    %290 = vmatprep.subr.bf16.mxu0 0
    %291 = vmatpush1.bf16.msra.mxu0 0
    %292 = vmatprep.subr.bf16.mxu0 0
    %293 = vmatpush1.bf16.msra.mxu0 0
    %294 = vmatprep.subr.bf16.mxu0 0
    %295 = vmatpush1.bf16.msra.mxu0 0
    %296 = vmatprep.subr.bf16.mxu0 0
    %297 = vmatpush1.bf16.msra.mxu0 0
    %298 = vmatprep.subr.bf16.mxu0 0
    %299 = vmatpush1.bf16.msra.mxu0 0
    %300 = vmatprep.subr.bf16.mxu0 0
    %301 = vmatpush1.bf16.msra.mxu0 0
    %302 = vmatprep.subr.bf16.mxu0 0
    %303 = vmatpush1.bf16.msra.mxu0 0
    %304 = vmatprep.subr.bf16.mxu0 0
    %305 = vmatpush1.bf16.msra.mxu0 0
    %306 = vmatprep.mubr.bf16.mxu0 0
    %307 = vmatmul.mubr.bf16.gmra.mrb[0].mxu0 %v272
    %v308 = vpop.f32.mrb[0].mxu0
    %v309 = vadd.f32 0.0, %v308
    %v310 = vpop.f32.mrb[0].mxu0
    %v311 = vpop.f32.mrb[0].mxu0
    %v312 = vadd.f32 0.0, %v311
    %v313 = vpop.f32.mrb[0].mxu0
    %314 = vdwg.mxu0
    %v315 = vpack.c.bf16 %v312, %v309
    %317 = vset.pattern.permute.xlu0 32
    %318 = vperm.xlu0 %317, %v21
    %v319 = vpop.permute.xlu0 %318
    %322 = vset.pattern.permute.xlu0 32
    %323 = vperm.xlu0 %322, %v22
    %v324 = vpop.permute.xlu0 %323
    %v326 = vlaneseq
    %v327 = vshrl.u32 %v326, 7
    %v328 = vsub.s32 6, %v327
    %v329 = vrot.slane %v43, %v328
    %v330 = vmul.f32 %v319, %v329
    %v331 = vmul.f32 %v324, %v329
    %v332 = vunpack.c.h.b16 %v27
    %v333 = vunpack.c.h.b16 %v28
    %v334 = vunpack.c.h.b16 %v29
    %v335 = vunpack.c.h.b16 %v30
    %v336 = vpack.c.b16 %v333, %v332
    %v337 = vpack.c.b16 %v335, %v334
    %v341 = vsel %vm59, %v315, 0
    %343 = vmatprep.subr.bf16.mxu0 0
    %344 = vmatpush1.bf16.msra.mxu0 %v336
    %345 = vmatprep.subr.bf16.mxu0 0
    %346 = vmatpush1.bf16.msra.mxu0 %v337
    %347 = vmatprep.subr.bf16.mxu0 0
    %348 = vmatpush1.bf16.msra.mxu0 0
    %349 = vmatprep.subr.bf16.mxu0 0
    %350 = vmatpush1.bf16.msra.mxu0 0
    %351 = vmatprep.subr.bf16.mxu0 0
    %352 = vmatpush1.bf16.msra.mxu0 0
    %353 = vmatprep.subr.bf16.mxu0 0
    %354 = vmatpush1.bf16.msra.mxu0 0
    %355 = vmatprep.subr.bf16.mxu0 0
    %356 = vmatpush1.bf16.msra.mxu0 0
    %357 = vmatprep.subr.bf16.mxu0 0
    %358 = vmatpush1.bf16.msra.mxu0 0
    %359 = vmatprep.subr.bf16.mxu0 0
    %360 = vmatpush1.bf16.msra.mxu0 0
    %361 = vmatprep.subr.bf16.mxu0 0
    %362 = vmatpush1.bf16.msra.mxu0 0
    %363 = vmatprep.subr.bf16.mxu0 0
    %364 = vmatpush1.bf16.msra.mxu0 0
    %365 = vmatprep.subr.bf16.mxu0 0
    %366 = vmatpush1.bf16.msra.mxu0 0
    %367 = vmatprep.subr.bf16.mxu0 0
    %368 = vmatpush1.bf16.msra.mxu0 0
    %369 = vmatprep.subr.bf16.mxu0 0
    %370 = vmatpush1.bf16.msra.mxu0 0
    %371 = vmatprep.subr.bf16.mxu0 0
    %372 = vmatpush1.bf16.msra.mxu0 0
    %373 = vmatprep.subr.bf16.mxu0 0
    %374 = vmatpush1.bf16.msra.mxu0 0
    %375 = vmatprep.mubr.bf16.mxu0 0
    %376 = vmatmul.mubr.bf16.gmra.mrb[0].mxu0 %v341
    %v377 = vpop.f32.mrb[0].mxu0
    %v378 = vadd.f32 %v330, %v377
    %v379 = vpop.f32.mrb[0].mxu0
    %v380 = vpop.f32.mrb[0].mxu0
    %v381 = vadd.f32 %v331, %v380
    %v382 = vpop.f32.mrb[0].mxu0
    %383 = vdwg.mxu0
    %v384 = vlaneseq
    %v385 = vshrl.u32 %v384, 7
    %v386 = vsub.s32 7, %v385
    %v387 = vrot.slane %v43, %v386
    %v388 = vadd.f32 %v378, %v387
    %v389 = vadd.f32 %v381, %v387
    %v390 = vmul.f32 %v388, 0.5
    %v391 = vmul.f32 %v389, 0.5
    %v392 = vtanh.pop %v390
    %v393 = vtanh.pop %v391
    %v394 = vadd.f32 %v392, 1.0
    %v395 = vadd.f32 %v393, 1.0
    %v396 = vmul.f32 %v394, 0.5
    %v397 = vmul.f32 %v395, 0.5
    %vm398 = vcmask 785408
    %v400 = vsel %vm398, %v396, 0
    %v403 = vsel %vm398, %v397, 0
    %405 = vmatprep.subr.mxu0 0.0
    %406 = vmatpush1.msra.mxu0 %v31
    %407 = vmatprep.subr.mxu0 0.0
    %408 = vmatpush1.msra.mxu0 %v32
    %409 = vmatprep.subr.mxu0 0.0
    %410 = vmatpush1.msra.mxu0 %v33
    %411 = vmatprep.subr.mxu0 0.0
    %412 = vmatpush1.msra.mxu0 %v34
    %413 = vmatprep.subr.mxu0 0.0
    %414 = vmatpush1.msra.mxu0 %v35
    %415 = vmatprep.subr.mxu0 0.0
    %416 = vmatpush1.msra.mxu0 %v36
    %417 = vmatprep.subr.mxu0 0.0
    %418 = vmatpush1.msra.mxu0 %v37
    %419 = vmatprep.subr.mxu0 0.0
    %420 = vmatpush1.msra.mxu0 %v38
    %421 = vmatprep.subr.mxu0 0.0
    %422 = vmatpush1.msra.mxu0 %v39
    %423 = vmatprep.subr.mxu0 0.0
    %424 = vmatpush1.msra.mxu0 %v40
    %425 = vmatprep.subr.mxu0 0.0
    %426 = vmatpush1.msra.mxu0 %v41
    %427 = vmatprep.subr.mxu0 0.0
    %428 = vmatpush1.msra.mxu0 %v42
    %429 = vmatprep.subr.mxu0 0.0
    %430 = vmatpush1.msra.mxu0 0.0
    %431 = vmatprep.subr.mxu0 0.0
    %432 = vmatpush1.msra.mxu0 0.0
    %433 = vmatprep.subr.mxu0 0.0
    %434 = vmatpush1.msra.mxu0 0.0
    %435 = vmatprep.subr.mxu0 0.0
    %436 = vmatpush1.msra.mxu0 0.0
    %437 = vmatprep.subr.mxu0 0.0
    %438 = vmatpush1.msra.mxu0 0.0
    %439 = vmatprep.subr.mxu0 0.0
    %440 = vmatpush1.msra.mxu0 0.0
    %441 = vmatprep.subr.mxu0 0.0
    %442 = vmatpush1.msra.mxu0 0.0
    %443 = vmatprep.subr.mxu0 0.0
    %444 = vmatpush1.msra.mxu0 0.0
    %445 = vmatprep.subr.mxu0 0.0
    %446 = vmatpush1.msra.mxu0 0.0
    %447 = vmatprep.subr.mxu0 0.0
    %448 = vmatpush1.msra.mxu0 0.0
    %449 = vmatprep.subr.mxu0 0.0
    %450 = vmatpush1.msra.mxu0 0.0
    %451 = vmatprep.subr.mxu0 0.0
    %452 = vmatpush1.msra.mxu0 0.0
    %453 = vmatprep.subr.mxu0 0.0
    %454 = vmatpush1.msra.mxu0 0.0
    %455 = vmatprep.subr.mxu0 0.0
    %456 = vmatpush1.msra.mxu0 0.0
    %457 = vmatprep.subr.mxu0 0.0
    %458 = vmatpush1.msra.mxu0 0.0
    %459 = vmatprep.subr.mxu0 0.0
    %460 = vmatpush1.msra.mxu0 0.0
    %461 = vmatprep.subr.mxu0 0.0
    %462 = vmatpush1.msra.mxu0 0.0
    %463 = vmatprep.subr.mxu0 0.0
    %464 = vmatpush1.msra.mxu0 0.0
    %465 = vmatprep.subr.mxu0 0.0
    %466 = vmatpush1.msra.mxu0 0.0
    %467 = vmatprep.subr.mxu0 0.0
    %468 = vmatpush1.msra.mxu0 0.0
    %469 = vmatprep.mubr.f32.mxu0 0.0
    %470 = vmatmul.mubr.f32.gmra.mrb[0].mxu0 %v400
    %v471 = vpop.f32.mrb[0].mxu0
    %v472 = vadd.f32 0.0, %v471
    %v473 = vpop.f32.mrb[0].mxu0
    %474 = vmatprep.mubr.f32.mxu0 0.0
    %475 = vmatmul.mubr.f32.gmra.mrb[0].mxu0 %v403
    %v476 = vpop.f32.mrb[0].mxu0
    %v477 = vadd.f32 0.0, %v476
    %v478 = vpop.f32.mrb[0].mxu0
    %479 = vdwg.mxu0
    %v480 = vmax.f32 %v472, 0.0
    %v481 = vmax.f32 %v477, 0.0
    %v482 = vand.u32 2147483647, %v472
    %v483 = vand.u32 2147483647, %v477
    %v484 = vsub.f32 0.0, %v482
    %v485 = vsub.f32 0.0, %v483
    %v486 = vmul.f32 %v484, 1.442695
    %v487 = vpow.pop %v486
    %v488 = vmul.f32 %v485, 1.442695
    %v489 = vpow.pop %v488
    %v490 = vadd.f32 %v487, 1.0
    %v491 = vadd.f32 %v489, 1.0
    %v492 = vlog2.pop %v490
    %v493 = vmul.f32 %v492, 0.6931472
    %v494 = vlog2.pop %v491
    %v495 = vmul.f32 %v494, 0.6931472
    %v496 = vadd.f32 %v480, %v493
    %v497 = vadd.f32 %v481, %v495
    %v498 = vlaneseq
    %v499 = vshrl.u32 %v498, 7
    %v500 = vsub.s32 0, %v499
    %v501 = vrot.slane %v44, %v500
    %v502 = vmul.f32 %v501, %v496
    %v503 = vmul.f32 %v501, %v497
    %vm504 = vcmask 48128
    %505 = vst.msk [vmem:[%s5] sm:$0xff] %vm504, %v502
    %506 = vst.msk [vmem:[%s5 + $0x8] sm:$0xff] %vm504, %v503
    %v508 = vsel %vm504, %v502, 0
    %v511 = vsel %vm504, %v503, 0
    %vm513 = vcmask 1045504
    %v515 = vsel %vm513, %v43, 0
    %517 = vmatprep.subr.mxu0 0.0
    %518 = vmatpush1.msra.mxu0 %v515
    %519 = vmatprep.subr.mxu0 0.0
    %520 = vmatpush1.msra.mxu0 0.0
    %521 = vmatprep.subr.mxu0 0.0
    %522 = vmatpush1.msra.mxu0 0.0
    %523 = vmatprep.subr.mxu0 0.0
    %524 = vmatpush1.msra.mxu0 0.0
    %525 = vmatprep.subr.mxu0 0.0
    %526 = vmatpush1.msra.mxu0 0.0
    %527 = vmatprep.subr.mxu0 0.0
    %528 = vmatpush1.msra.mxu0 0.0
    %529 = vmatprep.subr.mxu0 0.0
    %530 = vmatpush1.msra.mxu0 0.0
    %531 = vmatprep.subr.mxu0 0.0
    %532 = vmatpush1.msra.mxu0 0.0
    %533 = vmatprep.subr.mxu0 0.0
    %534 = vmatpush1.msra.mxu0 0.0
    %535 = vmatprep.subr.mxu0 0.0
    %536 = vmatpush1.msra.mxu0 0.0
    %537 = vmatprep.subr.mxu0 0.0
    %538 = vmatpush1.msra.mxu0 0.0
    %539 = vmatprep.subr.mxu0 0.0
    %540 = vmatpush1.msra.mxu0 0.0
    %541 = vmatprep.subr.mxu0 0.0
    %542 = vmatpush1.msra.mxu0 0.0
    %543 = vmatprep.subr.mxu0 0.0
    %544 = vmatpush1.msra.mxu0 0.0
    %545 = vmatprep.subr.mxu0 0.0
    %546 = vmatpush1.msra.mxu0 0.0
    %547 = vmatprep.subr.mxu0 0.0
    %548 = vmatpush1.msra.mxu0 0.0
    %549 = vmatprep.subr.mxu0 0.0
    %550 = vmatpush1.msra.mxu0 0.0
    %551 = vmatprep.subr.mxu0 0.0
    %552 = vmatpush1.msra.mxu0 0.0
    %553 = vmatprep.subr.mxu0 0.0
    %554 = vmatpush1.msra.mxu0 0.0
    %555 = vmatprep.subr.mxu0 0.0
    %556 = vmatpush1.msra.mxu0 0.0
    %557 = vmatprep.subr.mxu0 0.0
    %558 = vmatpush1.msra.mxu0 0.0
    %559 = vmatprep.subr.mxu0 0.0
    %560 = vmatpush1.msra.mxu0 0.0
    %561 = vmatprep.subr.mxu0 0.0
    %562 = vmatpush1.msra.mxu0 0.0
    %563 = vmatprep.subr.mxu0 0.0
    %564 = vmatpush1.msra.mxu0 0.0
    %565 = vmatprep.subr.mxu0 0.0
    %566 = vmatpush1.msra.mxu0 0.0
    %567 = vmatprep.subr.mxu0 0.0
    %568 = vmatpush1.msra.mxu0 0.0
    %569 = vmatprep.subr.mxu0 0.0
    %570 = vmatpush1.msra.mxu0 0.0
    %571 = vmatprep.subr.mxu0 0.0
    %572 = vmatpush1.msra.mxu0 0.0
    %573 = vmatprep.subr.mxu0 0.0
    %574 = vmatpush1.msra.mxu0 0.0
    %575 = vmatprep.subr.mxu0 0.0
    %576 = vmatpush1.msra.mxu0 0.0
    %577 = vmatprep.subr.mxu0 0.0
    %578 = vmatpush1.msra.mxu0 0.0
    %579 = vmatprep.subr.mxu0 0.0
    %580 = vmatpush1.msra.mxu0 0.0
    %581 = vmatprep.mubr.f32.mxu0 0.0
    %582 = vmatmul.mubr.f32.gmra.mrb[0].mxu0 %v508
    %v583 = vpop.f32.mrb[0].mxu0
    %v584 = vadd.f32 0.0, %v583
    %v585 = vpop.f32.mrb[0].mxu0
    %586 = vmatprep.mubr.f32.mxu0 0.0
    %587 = vmatmul.mubr.f32.gmra.mrb[0].mxu0 %v511
    %v588 = vpop.f32.mrb[0].mxu0
    %v589 = vadd.f32 0.0, %v588
    %v590 = vpop.f32.mrb[0].mxu0
    %591 = vdwg.mxu0
    %594 = vrot.lane.b32.xlu0 %v45, 96
    %v595 = vpop.permute.xlu0 %594
    %596 = vrot.lane.b32.xlu0 %v46, 96
    %v597 = vpop.permute.xlu0 %596
    %v600 = vmul.f32 %v584, %v595
    %v601 = vmul.f32 %v589, %v597
    %604 = vrot.lane.b32.xlu0 %v600, 96
    %v605 = vpop.permute.xlu0 %604
    %606 = vrot.lane.b32.xlu0 %v601, 96
    %v607 = vpop.permute.xlu0 %606
    %v610 = vadd.f32 %v600, %v605
    %v611 = vadd.f32 %v601, %v607
    %612 = vrot.lane.b32.xlu0 %v600, 64
    %v613 = vpop.permute.xlu0 %612
    %614 = vrot.lane.b32.xlu0 %v601, 64
    %v615 = vpop.permute.xlu0 %614
    %v618 = vadd.f32 %v610, %v613
    %v619 = vadd.f32 %v611, %v615
    %v620 = vmul.f32 %v262, %v618
    %v621 = vmul.f32 %v263, %v619
    %v622 = vpack.c.bf16 %v621, %v620
    %623 = vrot.lane.b32.xlu0 %v145, 64
    %v624 = vpop.permute.xlu0 %623
    %625 = vrot.lane.b32.xlu0 %v146, 64
    %v626 = vpop.permute.xlu0 %625
    %v630 = vsel %vm59, %v622, 0
    %632 = vmatprep.subr.bf16.mxu0 0
    %633 = vmatpush1.bf16.msra.mxu0 %v624
    %634 = vmatprep.subr.bf16.mxu0 0
    %635 = vmatpush1.bf16.msra.mxu0 %v626
    %636 = vmatprep.subr.bf16.mxu0 0
    %637 = vmatpush1.bf16.msra.mxu0 0
    %638 = vmatprep.subr.bf16.mxu0 0
    %639 = vmatpush1.bf16.msra.mxu0 0
    %640 = vmatprep.subr.bf16.mxu0 0
    %641 = vmatpush1.bf16.msra.mxu0 0
    %642 = vmatprep.subr.bf16.mxu0 0
    %643 = vmatpush1.bf16.msra.mxu0 0
    %644 = vmatprep.subr.bf16.mxu0 0
    %645 = vmatpush1.bf16.msra.mxu0 0
    %646 = vmatprep.subr.bf16.mxu0 0
    %647 = vmatpush1.bf16.msra.mxu0 0
    %648 = vmatprep.subr.bf16.mxu0 0
    %649 = vmatpush1.bf16.msra.mxu0 0
    %650 = vmatprep.subr.bf16.mxu0 0
    %651 = vmatpush1.bf16.msra.mxu0 0
    %652 = vmatprep.subr.bf16.mxu0 0
    %653 = vmatpush1.bf16.msra.mxu0 0
    %654 = vmatprep.subr.bf16.mxu0 0
    %655 = vmatpush1.bf16.msra.mxu0 0
    %656 = vmatprep.subr.bf16.mxu0 0
    %657 = vmatpush1.bf16.msra.mxu0 0
    %658 = vmatprep.subr.bf16.mxu0 0
    %659 = vmatpush1.bf16.msra.mxu0 0
    %660 = vmatprep.subr.bf16.mxu0 0
    %661 = vmatpush1.bf16.msra.mxu0 0
    %662 = vmatprep.subr.bf16.mxu0 0
    %663 = vmatpush1.bf16.msra.mxu0 0
    %664 = vmatprep.mubr.bf16.mxu0 0
    %665 = vmatmul.mubr.bf16.gmra.mrb[0].mxu0 %v630
    %v666 = vpop.f32.mrb[0].mxu0
    %v667 = vadd.f32 %v21, %v666
    %v668 = vpop.f32.mrb[0].mxu0
    %v669 = vpop.f32.mrb[0].mxu0
    %v670 = vadd.f32 %v22, %v669
    %v671 = vpop.f32.mrb[0].mxu0
    %672 = vdwg.mxu0
    %673 = vst.msk [vmem:[#allocation2] sm:$0xff] %vm59, %v667
    %674 = vst.msk [vmem:[#allocation2 + $0x8] sm:$0xff] %vm59, %v670
    // Predicated region
    $region18: #{aia_conv_pallas.1} parent=1 // pred_check
      _
    $region19: #{aia_conv_pallas.1} parent=1 // pred_check_branch
      %676 = sbr.rel (0) target = $region21
    $region20: #{aia_conv_pallas.1} parent=1 // pred_region
      %s678 = ssub.s32 256, 256
      %679 = vsyncadd [#allocation3], %s678
      %s680 = sshll.u32 [#allocation2], 4
      %s681 = int_to_ptr.vmem [resolvable:$true] %s680
      %686 = dma.vmem_to_hbm [thread:$0]  %s681, 256, %s4, [#allocation3], 128, 128, 8
    $region21: #{aia_conv_pallas.1} parent=1 // pred_fallthru
      _
    // Predicated region
    $region22: #{aia_conv_pallas.1} parent=1 // pred_check
      _
    $region23: #{aia_conv_pallas.1} parent=1 // pred_check_branch
      %688 = sbr.rel (0) target = $region25
    $region24: #{aia_conv_pallas.1} parent=1 // pred_region
      _
    $region25: #{aia_conv_pallas.1} parent=1 // pred_fallthru
      _
    // Predicated region
    $region26: #{aia_conv_pallas.1} parent=1 // pred_check
      _
    $region27: #{aia_conv_pallas.1} parent=1 // pred_check_branch
      %690 = sbr.rel (0) target = $region29
    $region28: #{aia_conv_pallas.1} parent=1 // pred_region
      %691 = dma.done [#allocation3], 256
    $region29: #{aia_conv_pallas.1} parent=1 // pred_fallthru
      _
    // Predicated region
    $region30: #{aia_conv_pallas.1} parent=1 // pred_check
      _
    $region31: #{aia_conv_pallas.1} parent=1 // pred_check_branch
      %693 = sbr.rel (0) target = $region33
    $region32: #{aia_conv_pallas.1} parent=1 // pred_region
      _
    $region33: #{aia_conv_pallas.1} parent=1 // pred_fallthru
      _
    %694 = vsyncpa [#allocation3], 1

</llo_original>
